<compile_context>
chip_gen: v7x
topology: tpu7x:2x2x1
jax: 0.10.0
libtpu: 0.0.40
codegen_flags: <defaults>
</compile_context>

<pallas_src>
import numpy as np
import jax
import jax.numpy as jnp
from jax.experimental import pallas as pl
from jax.experimental.pallas import tpu as pltpu

# ---------------- synthetic LogMelFbank / dMel configuration ----------------
N_FFT = 64                  # analysis window
HOP = 32                    # hop length
N_FREQ = N_FFT // 2 + 1     # 33 real-DFT bins
N_MELS = 16                 # logmelfbank.n_filterbank
SR = 16000                  # sample rate (Hz)

N_BITS = 4
Q_MIN = -7.0                # quantize_min_value
Q_MAX = 2.0                 # quantize_max_value

CODEBOOK = 2 ** N_BITS      # codebook_vocab_size = 16
PAD_VALUE = Q_MAX + 1.0     # 3.0
PAD_ID = CODEBOOK + 0       # 16
BOS_ID = CODEBOOK + 1       # 17
EOS_ID = CODEBOOK + 2       # 18
VOCAB = CODEBOOK + 3        # 19
N_BINS = CODEBOOK + 2       # discretizing matrix columns after bos/eos append = 18


# ---------------- deterministic parameter construction (numpy) ----------------
def build_discretizing_matrix():
    """Mirror __init__ with discretizer=None.  Returns (C, N_BINS) float32."""
    step = np.round((Q_MAX - Q_MIN) / (2 ** N_BITS - 1), 4)
    row = np.array([Q_MIN + i * step for i in range(2 ** N_BITS)], dtype=np.float64)
    dmat = np.tile(row[None, :], (N_MELS, 1))                     # (C, 2**n_bits)
    for i in range(2):                                            # append bos/eos values
        dmat = np.insert(dmat, dmat.shape[-1], Q_MAX + i + 2, axis=-1)
    return dmat.astype(np.float32)                                # (C, 18)


def build_dft_matrices():
    """Hann-windowed real-DFT cos/sin matrices, shape (n_fft, n_freq)."""
    n = np.arange(N_FFT)
    k = np.arange(N_FREQ)
    ang = 2.0 * np.pi * np.outer(n, k) / N_FFT
    window = 0.5 - 0.5 * np.cos(2.0 * np.pi * n / N_FFT)          # Hann
    cosw = (window[:, None] * np.cos(ang)).astype(np.float32)
    sinw = (window[:, None] * (-np.sin(ang))).astype(np.float32)
    return cosw, sinw


def build_mel_filterbank():
    """Triangular mel filterbank, shape (n_freq, n_mels)."""
    def hz_to_mel(f): return 2595.0 * np.log10(1.0 + f / 700.0)
    def mel_to_hz(m): return 700.0 * (10.0 ** (m / 2595.0) - 1.0)
    f = np.linspace(0.0, SR / 2.0, N_FREQ)
    mels = np.linspace(hz_to_mel(0.0), hz_to_mel(SR / 2.0), N_MELS + 2)
    hz = mel_to_hz(mels)
    fb = np.zeros((N_FREQ, N_MELS), dtype=np.float64)
    for m in range(N_MELS):
        left, center, right = hz[m], hz[m + 1], hz[m + 2]
        up = (f - left) / max(center - left, 1e-6)
        down = (right - f) / max(right - center, 1e-6)
        fb[:, m] = np.maximum(0.0, np.minimum(up, down))
    return fb.astype(np.float32)


# Codebook bins as compile-time constants.  Every filterbank row of the
# discretizing matrix is identical (np.tile + scalar inserts), so the kernel
# needs only the 15 midpoints between reachable bins 0..15:
#   * the reference max-clamps x to Q_MAX before the argmin, so the bos/eos
#     bins 16/17 (Q_MAX+2, Q_MAX+3) can never be the nearest bin;
#   * the min-clamp and the `x != PAD_VALUE` exemption never change the result
#     either (x < Q_MIN counts 0 midpoints; PAD_VALUE was already max-clamped);
#   * token = #{ i : x > midpoint_i } is the nearest bin with first-min
#     (lower-index) tie-breaking, exactly matching torch.argmin.
_DMAT = build_discretizing_matrix()                               # (C, 18)
assert np.all(_DMAT == _DMAT[0:1, :]), "discretizing matrix rows must be identical"
BIN_VALUES = tuple(float(v) for v in _DMAT[0])                    # 18 python floats
MIDPOINTS = tuple(float(0.5 * (float(_DMAT[0, i]) + float(_DMAT[0, i + 1])))
                  for i in range(CODEBOOK - 1))                   # 15 python floats

# zero-pad the fused-DFT row count (2*N_FREQ = 66) up to a multiple of 8
# sublanes so the (rows, TM) spectrum temporaries need no odd-shape relayout.
W_ROWS = ((2 * N_FREQ + 7) // 8) * 8                              # 72


# ---------------- Pallas kernel: logmel + discretize, transposed layout ----------------
def dmel_kernel(frames_ref, wt_ref, melt_ref, tok_ref):
    # frames_ref : (N_FFT, TM)        bf16, frames for this M-tile, transposed
    # wt_ref     : (W_ROWS, N_FFT)    bf16, [cos | -sin | 0-pad] windowed real-DFT, transposed
    # melt_ref   : (N_MELS, W_ROWS)   f32,  [melfb^T | melfb^T | 0-pad] (folds re^2+im^2 sum)
    # tok_ref    : (N_MELS, TM)       int32 output tokens (lane-dense along TM)
    fr = frames_ref[...]                                            # (64, TM) bf16

    # fused real-DFT: rows 0..32 = Re, rows 33..65 = Im, 66..71 = 0  -> (72, TM) f32
    spec = jnp.dot(wt_ref[...], fr, preferred_element_type=jnp.float32)
    sq = spec * spec                                                # |.|^2 pieces

    # power spectrum + mel projection in a single matmul (doubled filterbank)
    mel = jnp.dot(melt_ref[...], sq, preferred_element_type=jnp.float32)   # (C, TM)
    logmel = jnp.log(jnp.maximum(mel, 1e-10))

    # discretize_func (clamp + 18-way argmin) == count of midpoints strictly
    # below x; see MIDPOINTS comment above for the exactness argument.
    idx = jnp.zeros(logmel.shape, dtype=jnp.int32)
    for mid in MIDPOINTS:                                           # static unroll, 15 cmp+add
        idx += (logmel > mid).astype(jnp.int32)

    tok_ref[...] = idx


# ---------------- wrapper ----------------
def _round_up(a, b):
    return ((a + b - 1) // b) * b


def dmel_forward(x, x_lengths=None, tile_m=8192):
    """x: (B, T) float audio.  Returns (tokens (B, T'+2, C) int32, lengths (B) int32)."""
    B, T = x.shape
    if x_lengths is None:
        x_lengths = jnp.full((B,), T, dtype=jnp.int32)

    assert T >= N_FFT, "audio shorter than the analysis window"
    num_frames = (T - N_FFT) // HOP + 1
    assert num_frames >= 1

    M = B * num_frames
    # Tile selection: large tiles amortize the ~0.35 us per-grid-step overhead;
    # the cdiv(M, 2) cap keeps n_tiles >= 2 (evenly split) whenever M > 128 so
    # the "parallel" grid axis can use both v7x TensorCores; tile_m=8192 keeps
    # double-buffered VMEM ~10-12 MiB, inside the 32 MiB limit set below (and
    # well under v7x's 64 MiB physical VMEM per TC).
    TM = max(128, min(tile_m, _round_up((M + 1) // 2, 128)))
    M_pad = _round_up(M, TM)
    n_tiles = M_pad // TM

    # Framing via slice + concat of non-overlapping HOP-sample chunks (no XLA
    # gather): frame f of batch b = x[b, f*HOP : f*HOP + N_FFT].
    assert N_FFT % HOP == 0
    R = N_FFT // HOP
    used = (num_frames + R - 1) * HOP                               # == (num_frames-1)*HOP + N_FFT
    chunks = x[:, :used].reshape(B, num_frames + R - 1, HOP)
    frames = jnp.concatenate([chunks[:, r:r + num_frames, :] for r in range(R)],
                             axis=-1).astype(jnp.bfloat16)          # (B, T', n_fft)
    # transposed (n_fft, M) lane-dense layout; padded M columns are zero audio
    # (they quantize to bin 0 and are sliced off below).
    frames_t = jnp.pad(frames.reshape(M, N_FFT).T, ((0, 0), (0, M_pad - M)))

    cosw_np, sinw_np = build_dft_matrices()                          # (n_fft, n_freq) each
    melfb_np = build_mel_filterbank()                                # (n_freq, n_mels)

    # fused DFT matrix, transposed + zero-padded to W_ROWS rows, bf16 for the MXU
    wt_np = np.zeros((W_ROWS, N_FFT), dtype=np.float32)
    wt_np[:N_FREQ, :] = cosw_np.T
    wt_np[N_FREQ:2 * N_FREQ, :] = sinw_np.T
    wt = jnp.asarray(wt_np).astype(jnp.bfloat16)
    # doubled mel filterbank, transposed, contraction dim padded to W_ROWS, f32
    melt_np = np.zeros((N_MELS, W_ROWS), dtype=np.float32)
    melt_np[:, :N_FREQ] = melfb_np.T
    melt_np[:, N_FREQ:2 * N_FREQ] = melfb_np.T
    melt = jnp.asarray(melt_np)

    tokens_t = pl.pallas_call(
        dmel_kernel,
        out_shape=jax.ShapeDtypeStruct((N_MELS, M_pad), jnp.int32),
        grid_spec=pltpu.PrefetchScalarGridSpec(
            num_scalar_prefetch=0,
            grid=(n_tiles,),
            in_specs=[
                pl.BlockSpec((N_FFT, TM), lambda m: (0, m)),
                pl.BlockSpec((W_ROWS, N_FFT), lambda m: (0, 0)),
                pl.BlockSpec((N_MELS, W_ROWS), lambda m: (0, 0)),
            ],
            out_specs=pl.BlockSpec((N_MELS, TM), lambda m: (0, m)),
        ),
        compiler_params=pltpu.CompilerParams(
            dimension_semantics=("parallel",),
            vmem_limit_bytes=32 * 1024 * 1024,
        ),
    )(frames_t, wt, melt)

    # back to (B, T', C) -- tiny int32 detranspose, pure layout plumbing
    tokens = tokens_t[:, :M].T.reshape(B, num_frames, N_MELS)

    # feature lengths produced by the (synthetic) logmelfbank
    feat_len = jnp.clip((x_lengths - N_FFT) // HOP + 1, 0, num_frames).astype(jnp.int32)

    # add_bos_eos (glue): [bos, x_0..x_{L-1}, eos, pad...], lengths += 2
    out_T = num_frames + 2
    shifted = jnp.pad(tokens, ((0, 0), (1, 1), (0, 0)), constant_values=PAD_ID)
    pos = jnp.arange(out_T)[None, :, None]                # (1, T'+2, 1)
    lens = feat_len[:, None, None]                        # (B, 1, 1)
    out = jnp.where(pos == 0, BOS_ID,
          jnp.where(pos == lens + 1, EOS_ID,
          jnp.where(pos <= lens, shifted, PAD_ID))).astype(jnp.int32)
    return out, (feat_len + 2).astype(jnp.int32)


if __name__ == "__main__":
    key = jax.random.PRNGKey(0)
    B, T = 2, 512                                          # -> T' = 15 frames, C = 16 mels
    x = jax.random.normal(key, (B, T), dtype=jnp.float32)
    x_lengths = jnp.array([T, T - 2 * HOP], dtype=jnp.int32)

    tokens, lengths = dmel_forward(x, x_lengths)
    tokens = jax.block_until_ready(tokens)
    lengths = jax.block_until_ready(lengths)

    # basic sanity checks on semantics
    assert tokens.shape == (B, (T - N_FFT) // HOP + 1 + 2, N_MELS)
    assert tokens.dtype == jnp.int32
    assert bool(jnp.all(tokens[:, 0, :] == BOS_ID))
    for b in range(B):
        L = int(lengths[b])
        assert bool(jnp.all(tokens[b, L - 1, :] == EOS_ID))
        assert bool(jnp.all(tokens[b, L:, :] == PAD_ID))
        assert bool(jnp.all((tokens[b, 1:L - 1, :] >= 0) & (tokens[b, 1:L - 1, :] < CODEBOOK)))

    print("KERNEL_OK")
</pallas_src>

<mosaic_0001>
module attributes {stable_mosaic.version = 11 : i64} {
  func.func @dmel_kernel(%arg0: i32, %arg1: memref<64x128xbf16, #tpu.memory_space<vmem>>, %arg2: memref<72x64xbf16, #tpu.memory_space<vmem>>, %arg3: memref<16x72xf32, #tpu.memory_space<vmem>>, %arg4: memref<16x128xi32, #tpu.memory_space<vmem>>) attributes {dimension_semantics = [#tpu.dimension_semantics<parallel>], iteration_bounds = array<i64: 1>, scalar_prefetch = 0 : i64, scratch_operands = 0 : i64, tpu.core_type = #tpu.core_type<tc>, window_params = [{transform_indices = @transform_0, window_bounds = array<i64: 64, 128>}, {pipeline_mode = #tpu.pipeline_mode<synchronous>, transform_indices = @transform_1, window_bounds = array<i64: 72, 64>}, {pipeline_mode = #tpu.pipeline_mode<synchronous>, transform_indices = @transform_2, window_bounds = array<i64: 16, 72>}, {transform_indices = @transform_3, window_bounds = array<i64: 16, 128>}]} {
    %c0 = arith.constant 0 : index
    %c0_0 = arith.constant 0 : index
    %0 = vector.load %arg1[%c0, %c0_0] : memref<64x128xbf16, #tpu.memory_space<vmem>>, vector<64x128xbf16>
    %c0_1 = arith.constant 0 : index
    %c0_2 = arith.constant 0 : index
    %1 = vector.load %arg2[%c0_1, %c0_2] : memref<72x64xbf16, #tpu.memory_space<vmem>>, vector<72x64xbf16>
    %cst = arith.constant dense<0.000000e+00> : vector<72x128xf32>
    %2 = tpu.matmul %1, %0, %cst {dimension_numbers = #tpu.dot_dimension_numbers<[1], [0], [0], [1], [0, 0, 1, 1], [], []>} : vector<72x64xbf16>, vector<64x128xbf16>, vector<72x128xf32> -> vector<72x128xf32>
    %3 = arith.mulf %2, %2 : vector<72x128xf32>
    %c0_3 = arith.constant 0 : index
    %c0_4 = arith.constant 0 : index
    %4 = vector.load %arg3[%c0_3, %c0_4] : memref<16x72xf32, #tpu.memory_space<vmem>>, vector<16x72xf32>
    %cst_5 = arith.constant dense<0.000000e+00> : vector<16x128xf32>
    %5 = tpu.matmul %4, %3, %cst_5 {dimension_numbers = #tpu.dot_dimension_numbers<[1], [0], [0], [1], [0, 0, 1, 1], [], []>} : vector<16x72xf32>, vector<72x128xf32>, vector<16x128xf32> -> vector<16x128xf32>
    %cst_6 = arith.constant 1.000000e-10 : f32
    %6 = vector.broadcast %cst_6 : f32 to vector<16x128xf32>
    %7 = arith.maximumf %5, %6 : vector<16x128xf32>
    %8 = math.log %7 : vector<16x128xf32>
    %c0_i32 = arith.constant 0 : i32
    %9 = vector.broadcast %c0_i32 : i32 to vector<16x128xi32>
    %cst_7 = arith.constant -6.6999998 : f32
    %10 = vector.broadcast %cst_7 : f32 to vector<16x128xf32>
    %11 = arith.cmpf ogt, %8, %10 : vector<16x128xf32>
    %12 = arith.extui %11 : vector<16x128xi1> to vector<16x128xi32>
    %13 = arith.addi %9, %12 : vector<16x128xi32>
    %cst_8 = arith.constant -6.10000038 : f32
    %14 = vector.broadcast %cst_8 : f32 to vector<16x128xf32>
    %15 = arith.cmpf ogt, %8, %14 : vector<16x128xf32>
    %16 = arith.extui %15 : vector<16x128xi1> to vector<16x128xi32>
    %17 = arith.addi %13, %16 : vector<16x128xi32>
    %cst_9 = arith.constant -5.500000e+00 : f32
    %18 = vector.broadcast %cst_9 : f32 to vector<16x128xf32>
    %19 = arith.cmpf ogt, %8, %18 : vector<16x128xf32>
    %20 = arith.extui %19 : vector<16x128xi1> to vector<16x128xi32>
    %21 = arith.addi %17, %20 : vector<16x128xi32>
    %cst_10 = arith.constant -4.89999962 : f32
    %22 = vector.broadcast %cst_10 : f32 to vector<16x128xf32>
    %23 = arith.cmpf ogt, %8, %22 : vector<16x128xf32>
    %24 = arith.extui %23 : vector<16x128xi1> to vector<16x128xi32>
    %25 = arith.addi %21, %24 : vector<16x128xi32>
    %cst_11 = arith.constant -4.300000e+00 : f32
    %26 = vector.broadcast %cst_11 : f32 to vector<16x128xf32>
    %27 = arith.cmpf ogt, %8, %26 : vector<16x128xf32>
    %28 = arith.extui %27 : vector<16x128xi1> to vector<16x128xi32>
    %29 = arith.addi %25, %28 : vector<16x128xi32>
    %cst_12 = arith.constant -3.700000e+00 : f32
    %30 = vector.broadcast %cst_12 : f32 to vector<16x128xf32>
    %31 = arith.cmpf ogt, %8, %30 : vector<16x128xf32>
    %32 = arith.extui %31 : vector<16x128xi1> to vector<16x128xi32>
    %33 = arith.addi %29, %32 : vector<16x128xi32>
    %cst_13 = arith.constant -3.100000e+00 : f32
    %34 = vector.broadcast %cst_13 : f32 to vector<16x128xf32>
    %35 = arith.cmpf ogt, %8, %34 : vector<16x128xf32>
    %36 = arith.extui %35 : vector<16x128xi1> to vector<16x128xi32>
    %37 = arith.addi %33, %36 : vector<16x128xi32>
    %cst_14 = arith.constant -2.500000e+00 : f32
    %38 = vector.broadcast %cst_14 : f32 to vector<16x128xf32>
    %39 = arith.cmpf ogt, %8, %38 : vector<16x128xf32>
    %40 = arith.extui %39 : vector<16x128xi1> to vector<16x128xi32>
    %41 = arith.addi %37, %40 : vector<16x128xi32>
    %cst_15 = arith.constant -1.9000001 : f32
    %42 = vector.broadcast %cst_15 : f32 to vector<16x128xf32>
    %43 = arith.cmpf ogt, %8, %42 : vector<16x128xf32>
    %44 = arith.extui %43 : vector<16x128xi1> to vector<16x128xi32>
    %45 = arith.addi %41, %44 : vector<16x128xi32>
    %cst_16 = arith.constant -1.300000e+00 : f32
    %46 = vector.broadcast %cst_16 : f32 to vector<16x128xf32>
    %47 = arith.cmpf ogt, %8, %46 : vector<16x128xf32>
    %48 = arith.extui %47 : vector<16x128xi1> to vector<16x128xi32>
    %49 = arith.addi %45, %48 : vector<16x128xi32>
    %cst_17 = arith.constant -0.699999988 : f32
    %50 = vector.broadcast %cst_17 : f32 to vector<16x128xf32>
    %51 = arith.cmpf ogt, %8, %50 : vector<16x128xf32>
    %52 = arith.extui %51 : vector<16x128xi1> to vector<16x128xi32>
    %53 = arith.addi %49, %52 : vector<16x128xi32>
    %cst_18 = arith.constant -1.000000e-01 : f32
    %54 = vector.broadcast %cst_18 : f32 to vector<16x128xf32>
    %55 = arith.cmpf ogt, %8, %54 : vector<16x128xf32>
    %56 = arith.extui %55 : vector<16x128xi1> to vector<16x128xi32>
    %57 = arith.addi %53, %56 : vector<16x128xi32>
    %cst_19 = arith.constant 5.000000e-01 : f32
    %58 = vector.broadcast %cst_19 : f32 to vector<16x128xf32>
    %59 = arith.cmpf ogt, %8, %58 : vector<16x128xf32>
    %60 = arith.extui %59 : vector<16x128xi1> to vector<16x128xi32>
    %61 = arith.addi %57, %60 : vector<16x128xi32>
    %cst_20 = arith.constant 1.100000e+00 : f32
    %62 = vector.broadcast %cst_20 : f32 to vector<16x128xf32>
    %63 = arith.cmpf ogt, %8, %62 : vector<16x128xf32>
    %64 = arith.extui %63 : vector<16x128xi1> to vector<16x128xi32>
    %65 = arith.addi %61, %64 : vector<16x128xi32>
    %cst_21 = arith.constant 1.700000e+00 : f32
    %66 = vector.broadcast %cst_21 : f32 to vector<16x128xf32>
    %67 = arith.cmpf ogt, %8, %66 : vector<16x128xf32>
    %68 = arith.extui %67 : vector<16x128xi1> to vector<16x128xi32>
    %69 = arith.addi %65, %68 : vector<16x128xi32>
    %c0_22 = arith.constant 0 : index
    %c0_23 = arith.constant 0 : index
    %70 = vector.load %arg4[%c0_22, %c0_23] : memref<16x128xi32, #tpu.memory_space<vmem>>, vector<16x128xi32>
    tpu.vector_store %arg4[%c0_22, %c0_23], %69 {strides = array<i32>} : memref<16x128xi32, #tpu.memory_space<vmem>>, vector<16x128xi32>,
    return
  }
  func.func @transform_0(%arg0: i32) -> (i32, i32) {
    %c0_i32 = arith.constant 0 : i32
    %c0_i32_0 = arith.constant 0 : i32
    return %c0_i32, %arg0 : i32, i32
  }
  func.func @transform_1(%arg0: i32) -> (i32, i32) {
    %c0_i32 = arith.constant 0 : i32
    %c0_i32_0 = arith.constant 0 : i32
    %c0_i32_1 = arith.constant 0 : i32
    return %c0_i32, %c0_i32_0 : i32, i32
  }
  func.func @transform_2(%arg0: i32) -> (i32, i32) {
    %c0_i32 = arith.constant 0 : i32
    %c0_i32_0 = arith.constant 0 : i32
    %c0_i32_1 = arith.constant 0 : i32
    return %c0_i32, %c0_i32_0 : i32, i32
  }
  func.func @transform_3(%arg0: i32) -> (i32, i32) {
    %c0_i32 = arith.constant 0 : i32
    %c0_i32_0 = arith.constant 0 : i32
    return %c0_i32, %arg0 : i32, i32
  }
}

</mosaic_0001>

<llo_original>
// kernel: tpu_custom_call.1
$region0: #{tpu_custom_call.1}
  #allocation0 [shape = 'u32[]', space=smem, size = 0x4, offset = 0x4, fixed_abs, tag = 'smem constant byte address 0x4 - core index']
  #allocation1 [shape = 'u32[144,128]{1,0:T(1,128)}', space=vmem, size = 0x12000, scoped, tag = 'internal scratch']
  %s0 = inlined_call_operand.vmem [shape: bf16[64,128], index: 0, kind: input, shape index: {}]
  %s1 = inlined_call_operand.vmem [shape: bf16[72,64], index: 1, kind: input, shape index: {}]
  %s2 = inlined_call_operand.vmem [shape: f32[16,72], index: 2, kind: input, shape index: {}]
  %s3 = inlined_call_operand.hbm [shape: s32[16,128], index: 3, kind: output, shape index: {}]
  %s4 = sld [smem:[#allocation0]]
  $region22: #{tpu_custom_call.1} parent=0
    _
  %s6 = ssub.s32 1, %s4
  %s7 = scalar_select 0, %s6, %s4
  $region1: #{tpu_custom_call.1} parent=0
    #allocation2 [shape = 'u8[8192]{0}', space=vmem, size = 0x2000, scoped, tag = 'output window, operand 0, single buffered']
    #allocation3 [shape = 's32[1]{0}', space=sflag, size = 0x4, scoped, tag = 'scoped memory for tpu_custom_call.1']
    %8 = vsyncpa [#allocation3], 0
    // Predicated region
    $region2: #{tpu_custom_call.1} parent=1 // pred_check
      _
    $region3: #{tpu_custom_call.1} parent=1 // pred_check_branch
      %10 = sbr.rel (0) target = $region5
    $region4: #{tpu_custom_call.1} parent=1 // pred_region
      _
    $region5: #{tpu_custom_call.1} parent=1 // pred_fallthru
      _
    // Predicated region
    $region6: #{tpu_custom_call.1} parent=1 // pred_check
      _
    $region7: #{tpu_custom_call.1} parent=1 // pred_check_branch
      %12 = sbr.rel (0) target = $region9
    $region8: #{tpu_custom_call.1} parent=1 // pred_region
      _
    $region9: #{tpu_custom_call.1} parent=1 // pred_fallthru
      _
    // Predicated region
    $region10: #{tpu_custom_call.1} parent=1 // pred_check
      _
    $region11: #{tpu_custom_call.1} parent=1 // pred_check_branch
      %14 = sbr.rel (0) target = $region13
    $region12: #{tpu_custom_call.1} parent=1 // pred_region
      _
    $region13: #{tpu_custom_call.1} parent=1 // pred_fallthru
      _
    %v16 = vld [vmem:[%s0] sm:$0xf]
    %v17 = vld [vmem:[%s0 + $0x4] sm:$0xf]
    %v18 = vld [vmem:[%s0 + $0x8] sm:$0xf]
    %v19 = vld [vmem:[%s0 + $0xc] sm:$0xf]
    %v20 = vld [vmem:[%s0 + $0x10] sm:$0xf]
    %v21 = vld [vmem:[%s0 + $0x14] sm:$0xf]
    %v22 = vld [vmem:[%s0 + $0x18] sm:$0xf]
    %v23 = vld [vmem:[%s0 + $0x1c] sm:$0xf]
    %v24 = vld [vmem:[%s1] sm:$0xf]
    %v25 = vld [vmem:[%s1 + $0x4] sm:$0xf]
    %v26 = vld [vmem:[%s1 + $0x8] sm:$0xf]
    %v27 = vld [vmem:[%s1 + $0xc] sm:$0xf]
    %v28 = vld [vmem:[%s1 + $0x10] sm:$0xf]
    %v29 = vld [vmem:[%s1 + $0x14] sm:$0xf]
    %v30 = vld [vmem:[%s1 + $0x18] sm:$0xf]
    %v31 = vld [vmem:[%s1 + $0x1c] sm:$0xf]
    %v32 = vld [vmem:[%s1 + $0x20] sm:$0xf]
    %v42 = vunpack.c.l.b16 %v24
    %v43 = vunpack.c.l.b16 %v25
    %v44 = vunpack.c.l.b16 %v26
    %v45 = vunpack.c.l.b16 %v27
    %v46 = vunpack.c.l.b16 %v28
    %v47 = vunpack.c.l.b16 %v29
    %v48 = vunpack.c.l.b16 %v30
    %v49 = vunpack.c.l.b16 %v31
    %v50 = vunpack.c.l.b16 %v32
    %v51 = vpack.c.b16 %v43, %v42
    %v52 = vpack.c.b16 %v45, %v44
    %v53 = vpack.c.b16 %v47, %v46
    %v54 = vpack.c.b16 %v49, %v48
    %v55 = vpack.c.b16 %v50, %v50
    %v64 = vunpack.c.l.b16 %v16
    %v65 = vunpack.c.l.b16 %v17
    %v66 = vunpack.c.l.b16 %v18
    %v67 = vunpack.c.l.b16 %v19
    %v68 = vunpack.c.l.b16 %v20
    %v69 = vunpack.c.l.b16 %v21
    %v70 = vunpack.c.l.b16 %v22
    %v71 = vunpack.c.l.b16 %v23
    %v72 = vpack.c.b16 %v65, %v64
    %v73 = vpack.c.b16 %v67, %v66
    %v74 = vpack.c.b16 %v69, %v68
    %v75 = vpack.c.b16 %v71, %v70
    %vm80 = vcmask 523264
    %v82 = vsel %vm80, %v51, 0
    %v85 = vsel %vm80, %v52, 0
    %v88 = vsel %vm80, %v53, 0
    %v91 = vsel %vm80, %v54, 0
    %v94 = vsel %vm80, %v55, 0
    %96 = vmatprep.subr.bf16.mxu0 0
    %97 = vmatpush1.bf16.msra.mxu0 %v72
    %98 = vmatprep.subr.bf16.mxu0 0
    %99 = vmatpush1.bf16.msra.mxu0 %v73
    %100 = vmatprep.subr.bf16.mxu0 0
    %101 = vmatpush1.bf16.msra.mxu0 %v74
    %102 = vmatprep.subr.bf16.mxu0 0
    %103 = vmatpush1.bf16.msra.mxu0 %v75
    %104 = vmatprep.subr.bf16.mxu0 0
    %105 = vmatpush1.bf16.msra.mxu0 0
    %106 = vmatprep.subr.bf16.mxu0 0
    %107 = vmatpush1.bf16.msra.mxu0 0
    %108 = vmatprep.subr.bf16.mxu0 0
    %109 = vmatpush1.bf16.msra.mxu0 0
    %110 = vmatprep.subr.bf16.mxu0 0
    %111 = vmatpush1.bf16.msra.mxu0 0
    %112 = vmatprep.subr.bf16.mxu0 0
    %113 = vmatpush1.bf16.msra.mxu0 0
    %114 = vmatprep.subr.bf16.mxu0 0
    %115 = vmatpush1.bf16.msra.mxu0 0
    %116 = vmatprep.subr.bf16.mxu0 0
    %117 = vmatpush1.bf16.msra.mxu0 0
    %118 = vmatprep.subr.bf16.mxu0 0
    %119 = vmatpush1.bf16.msra.mxu0 0
    %120 = vmatprep.subr.bf16.mxu0 0
    %121 = vmatpush1.bf16.msra.mxu0 0
    %122 = vmatprep.subr.bf16.mxu0 0
    %123 = vmatpush1.bf16.msra.mxu0 0
    %124 = vmatprep.subr.bf16.mxu0 0
    %125 = vmatpush1.bf16.msra.mxu0 0
    %126 = vmatprep.subr.bf16.mxu0 0
    %127 = vmatpush1.bf16.msra.mxu0 0
    %128 = vmatprep.mubr.bf16.mxu0 0
    %129 = vmatmul.mubr.bf16.gmra.mrb[0].mxu0 %v82
    %v130 = vpop.f32.mrb[0].mxu0
    %v131 = vadd.f32 0.0, %v130
    %v132 = vpop.f32.mrb[0].mxu0
    %v133 = vpop.f32.mrb[0].mxu0
    %v134 = vadd.f32 0.0, %v133
    %v135 = vpop.f32.mrb[0].mxu0
    %136 = vmatprep.mubr.bf16.mxu0 0
    %137 = vmatmul.mubr.bf16.gmra.mrb[0].mxu0 %v85
    %v138 = vpop.f32.mrb[0].mxu0
    %v139 = vadd.f32 0.0, %v138
    %v140 = vpop.f32.mrb[0].mxu0
    %v141 = vpop.f32.mrb[0].mxu0
    %v142 = vadd.f32 0.0, %v141
    %v143 = vpop.f32.mrb[0].mxu0
    %144 = vmatprep.mubr.bf16.mxu0 0
    %145 = vmatmul.mubr.bf16.gmra.mrb[0].mxu0 %v88
    %v146 = vpop.f32.mrb[0].mxu0
    %v147 = vadd.f32 0.0, %v146
    %v148 = vpop.f32.mrb[0].mxu0
    %v149 = vpop.f32.mrb[0].mxu0
    %v150 = vadd.f32 0.0, %v149
    %v151 = vpop.f32.mrb[0].mxu0
    %152 = vmatprep.mubr.bf16.mxu0 0
    %153 = vmatmul.mubr.bf16.gmra.mrb[0].mxu0 %v91
    %v154 = vpop.f32.mrb[0].mxu0
    %v155 = vadd.f32 0.0, %v154
    %v156 = vpop.f32.mrb[0].mxu0
    %v157 = vpop.f32.mrb[0].mxu0
    %v158 = vadd.f32 0.0, %v157
    %v159 = vpop.f32.mrb[0].mxu0
    %160 = vmatprep.mubr.bf16.mxu0 0
    %161 = vmatmul.mubr.bf16.gmra.mrb[0].mxu0 %v94
    %v162 = vpop.f32.mrb[0].mxu0
    %v163 = vadd.f32 0.0, %v162
    %v164 = vpop.f32.mrb[0].mxu0
    %v165 = vpop.f32.mrb[0].mxu0
    %v166 = vpop.f32.mrb[0].mxu0
    %167 = vdwg.mxu0
    %v168 = vmul.f32 %v131, %v131
    %v169 = vmul.f32 %v134, %v134
    %v170 = vmul.f32 %v139, %v139
    %v171 = vmul.f32 %v142, %v142
    %v172 = vmul.f32 %v147, %v147
    %v173 = vmul.f32 %v150, %v150
    %v174 = vmul.f32 %v155, %v155
    %v175 = vmul.f32 %v158, %v158
    %v176 = vmul.f32 %v163, %v163
    %v177 = vld [vmem:[%s2] sm:$0xff]
    %v178 = vld [vmem:[%s2 + $0x8] sm:$0xff]
    %vm179 = vcmask 588800
    %v181 = vsel %vm179, %v177, 0
    %v184 = vsel %vm179, %v178, 0
    %186 = vmatprep.subr.mxu0 0.0
    %187 = vmatpush1.msra.mxu0 %v168
    %188 = vmatprep.subr.mxu0 0.0
    %189 = vmatpush1.msra.mxu0 %v169
    %190 = vmatprep.subr.mxu0 0.0
    %191 = vmatpush1.msra.mxu0 %v170
    %192 = vmatprep.subr.mxu0 0.0
    %193 = vmatpush1.msra.mxu0 %v171
    %194 = vmatprep.subr.mxu0 0.0
    %195 = vmatpush1.msra.mxu0 %v172
    %196 = vmatprep.subr.mxu0 0.0
    %197 = vmatpush1.msra.mxu0 %v173
    %198 = vmatprep.subr.mxu0 0.0
    %199 = vmatpush1.msra.mxu0 %v174
    %200 = vmatprep.subr.mxu0 0.0
    %201 = vmatpush1.msra.mxu0 %v175
    %202 = vmatprep.subr.mxu0 0.0
    %203 = vmatpush1.msra.mxu0 %v176
    %204 = vmatprep.subr.mxu0 0.0
    %205 = vmatpush1.msra.mxu0 0.0
    %206 = vmatprep.subr.mxu0 0.0
    %207 = vmatpush1.msra.mxu0 0.0
    %208 = vmatprep.subr.mxu0 0.0
    %209 = vmatpush1.msra.mxu0 0.0
    %210 = vmatprep.subr.mxu0 0.0
    %211 = vmatpush1.msra.mxu0 0.0
    %212 = vmatprep.subr.mxu0 0.0
    %213 = vmatpush1.msra.mxu0 0.0
    %214 = vmatprep.subr.mxu0 0.0
    %215 = vmatpush1.msra.mxu0 0.0
    %216 = vmatprep.subr.mxu0 0.0
    %217 = vmatpush1.msra.mxu0 0.0
    %218 = vmatprep.subr.mxu0 0.0
    %219 = vmatpush1.msra.mxu0 0.0
    %220 = vmatprep.subr.mxu0 0.0
    %221 = vmatpush1.msra.mxu0 0.0
    %222 = vmatprep.subr.mxu0 0.0
    %223 = vmatpush1.msra.mxu0 0.0
    %224 = vmatprep.subr.mxu0 0.0
    %225 = vmatpush1.msra.mxu0 0.0
    %226 = vmatprep.subr.mxu0 0.0
    %227 = vmatpush1.msra.mxu0 0.0
    %228 = vmatprep.subr.mxu0 0.0
    %229 = vmatpush1.msra.mxu0 0.0
    %230 = vmatprep.subr.mxu0 0.0
    %231 = vmatpush1.msra.mxu0 0.0
    %232 = vmatprep.subr.mxu0 0.0
    %233 = vmatpush1.msra.mxu0 0.0
    %234 = vmatprep.subr.mxu0 0.0
    %235 = vmatpush1.msra.mxu0 0.0
    %236 = vmatprep.subr.mxu0 0.0
    %237 = vmatpush1.msra.mxu0 0.0
    %238 = vmatprep.subr.mxu0 0.0
    %239 = vmatpush1.msra.mxu0 0.0
    %240 = vmatprep.subr.mxu0 0.0
    %241 = vmatpush1.msra.mxu0 0.0
    %242 = vmatprep.subr.mxu0 0.0
    %243 = vmatpush1.msra.mxu0 0.0
    %244 = vmatprep.subr.mxu0 0.0
    %245 = vmatpush1.msra.mxu0 0.0
    %246 = vmatprep.subr.mxu0 0.0
    %247 = vmatpush1.msra.mxu0 0.0
    %248 = vmatprep.subr.mxu0 0.0
    %249 = vmatpush1.msra.mxu0 0.0
    %250 = vmatprep.mubr.f32.mxu0 0.0
    %251 = vmatmul.mubr.f32.gmra.mrb[0].mxu0 %v181
    %v252 = vpop.f32.mrb[0].mxu0
    %v253 = vadd.f32 0.0, %v252
    %v254 = vpop.f32.mrb[0].mxu0
    %255 = vmatprep.mubr.f32.mxu0 0.0
    %256 = vmatmul.mubr.f32.gmra.mrb[0].mxu0 %v184
    %v257 = vpop.f32.mrb[0].mxu0
    %v258 = vadd.f32 0.0, %v257
    %v259 = vpop.f32.mrb[0].mxu0
    %260 = vdwg.mxu0
    %v261 = vmax.f32 %v253, 1e-10
    %v262 = vmax.f32 %v258, 1e-10
    %v263 = vlog2.pop %v261
    %v264 = vmul.f32 %v263, 0.6931472
    %v265 = vlog2.pop %v262
    %v266 = vmul.f32 %v265, 0.6931472
    %vm267 = vcmp.gt.f32.partialorder %v264, -6.7
    %vm268 = vcmp.gt.f32.partialorder %v266, -6.7
    %v269 = vsel %vm267, 1, 0
    %v270 = vsel %vm268, 1, 0
    %vm271 = vcmp.gt.f32.partialorder %v264, -6.1000004
    %vm272 = vcmp.gt.f32.partialorder %v266, -6.1000004
    %v273 = vsel %vm271, 1, 0
    %v274 = vsel %vm272, 1, 0
    %v275 = vadd.s32 %v269, %v273
    %v276 = vadd.s32 %v270, %v274
    %vm277 = vcmp.gt.f32.partialorder %v264, -5.5
    %vm278 = vcmp.gt.f32.partialorder %v266, -5.5
    %v279 = vsel %vm277, 1, 0
    %v280 = vsel %vm278, 1, 0
    %v281 = vadd.s32 %v275, %v279
    %v282 = vadd.s32 %v276, %v280
    %vm283 = vcmp.gt.f32.partialorder %v264, -4.8999996
    %vm284 = vcmp.gt.f32.partialorder %v266, -4.8999996
    %v285 = vsel %vm283, 1, 0
    %v286 = vsel %vm284, 1, 0
    %v287 = vadd.s32 %v281, %v285
    %v288 = vadd.s32 %v282, %v286
    %vm289 = vcmp.gt.f32.partialorder %v264, -4.3
    %vm290 = vcmp.gt.f32.partialorder %v266, -4.3
    %v291 = vsel %vm289, 1, 0
    %v292 = vsel %vm290, 1, 0
    %v293 = vadd.s32 %v287, %v291
    %v294 = vadd.s32 %v288, %v292
    %vm295 = vcmp.gt.f32.partialorder %v264, -3.7
    %vm296 = vcmp.gt.f32.partialorder %v266, -3.7
    %v297 = vsel %vm295, 1, 0
    %v298 = vsel %vm296, 1, 0
    %v299 = vadd.s32 %v293, %v297
    %v300 = vadd.s32 %v294, %v298
    %vm301 = vcmp.gt.f32.partialorder %v264, -3.1
    %vm302 = vcmp.gt.f32.partialorder %v266, -3.1
    %v303 = vsel %vm301, 1, 0
    %v304 = vsel %vm302, 1, 0
    %v305 = vadd.s32 %v299, %v303
    %v306 = vadd.s32 %v300, %v304
    %vm307 = vcmp.gt.f32.partialorder %v264, -2.5
    %vm308 = vcmp.gt.f32.partialorder %v266, -2.5
    %v309 = vsel %vm307, 1, 0
    %v310 = vsel %vm308, 1, 0
    %v311 = vadd.s32 %v305, %v309
    %v312 = vadd.s32 %v306, %v310
    %vm313 = vcmp.gt.f32.partialorder %v264, -1.9000001
    %vm314 = vcmp.gt.f32.partialorder %v266, -1.9000001
    %v315 = vsel %vm313, 1, 0
    %v316 = vsel %vm314, 1, 0
    %v317 = vadd.s32 %v311, %v315
    %v318 = vadd.s32 %v312, %v316
    %vm319 = vcmp.gt.f32.partialorder %v264, -1.3
    %vm320 = vcmp.gt.f32.partialorder %v266, -1.3
    %v321 = vsel %vm319, 1, 0
    %v322 = vsel %vm320, 1, 0
    %v323 = vadd.s32 %v317, %v321
    %v324 = vadd.s32 %v318, %v322
    %vm325 = vcmp.gt.f32.partialorder %v264, -0.7
    %vm326 = vcmp.gt.f32.partialorder %v266, -0.7
    %v327 = vsel %vm325, 1, 0
    %v328 = vsel %vm326, 1, 0
    %v329 = vadd.s32 %v323, %v327
    %v330 = vadd.s32 %v324, %v328
    %vm331 = vcmp.gt.f32.partialorder %v264, -0.1
    %vm332 = vcmp.gt.f32.partialorder %v266, -0.1
    %v333 = vsel %vm331, 1, 0
    %v334 = vsel %vm332, 1, 0
    %v335 = vadd.s32 %v329, %v333
    %v336 = vadd.s32 %v330, %v334
    %vm337 = vcmp.gt.f32.partialorder %v264, 0.5
    %vm338 = vcmp.gt.f32.partialorder %v266, 0.5
    %v339 = vsel %vm337, 1, 0
    %v340 = vsel %vm338, 1, 0
    %v341 = vadd.s32 %v335, %v339
    %v342 = vadd.s32 %v336, %v340
    %vm343 = vcmp.gt.f32.partialorder %v264, 1.1
    %vm344 = vcmp.gt.f32.partialorder %v266, 1.1
    %v345 = vsel %vm343, 1, 0
    %v346 = vsel %vm344, 1, 0
    %v347 = vadd.s32 %v341, %v345
    %v348 = vadd.s32 %v342, %v346
    %vm349 = vcmp.gt.f32.partialorder %v264, 1.7
    %vm350 = vcmp.gt.f32.partialorder %v266, 1.7
    %v351 = vsel %vm349, 1, 0
    %v352 = vsel %vm350, 1, 0
    %v353 = vadd.s32 %v347, %v351
    %v354 = vadd.s32 %v348, %v352
    %355 = vst [vmem:[#allocation2] sm:$0xff] %v353
    %356 = vst [vmem:[#allocation2 + $0x8] sm:$0xff] %v354
    // Predicated region
    $region14: #{tpu_custom_call.1} parent=1 // pred_check
      _
    $region15: #{tpu_custom_call.1} parent=1 // pred_check_branch
      %358 = sbr.rel (0) target = $region17
    $region16: #{tpu_custom_call.1} parent=1 // pred_region
      %s360 = ssub.s32 256, 256
      %361 = vsyncadd [#allocation3], %s360
      %s362 = sshll.u32 [#allocation2], 4
      %s363 = int_to_ptr.vmem [resolvable:$true] %s362
      %368 = dma.vmem_to_hbm [thread:$0]  %s363, 256, %s3, [#allocation3], 128, 128, 8
    $region17: #{tpu_custom_call.1} parent=1 // pred_fallthru
      _
    // Predicated region
    $region18: #{tpu_custom_call.1} parent=1 // pred_check
      _
    $region19: #{tpu_custom_call.1} parent=1 // pred_check_branch
      %370 = sbr.rel (0) target = $region21
    $region20: #{tpu_custom_call.1} parent=1 // pred_region
      %371 = dma.done [#allocation3], 256
    $region21: #{tpu_custom_call.1} parent=1 // pred_fallthru
      _
    %372 = vsyncpa [#allocation3], 1

</llo_original>
